<compile_context>
chip_gen: v6e
topology: v6e:2x2x1
jax: 0.10.0
libtpu: 0.0.40
codegen_flags: <defaults>
</compile_context>

<pallas_src>
import jax
import jax.numpy as jnp
from jax.experimental import pallas as pl
from jax.experimental.pallas import tpu as pltpu

IN_DIM = 52
HID_DIM = 13
OUT_DIM = 3


def _round_up(n, m):
    return ((n + m - 1) // m) * m


def _choose_tb(B, block_batch, min_grid_steps):
    # Small batches: one full-extent tile (block dims equal the full array dims,
    # so the (8, 128) divisibility rule does not apply).
    if B <= 512:
        return B
    # Lane-aligned tiles (the feature-major out block's lane dim must be a
    # multiple of 128).  Aim for >= min_grid_steps grid steps so v7x's two
    # TensorCores both get work; cap at block_batch (the padded-to-128-lane x
    # tile is tb*128*4 B, ~1 MiB double-buffered at tb=1024 -> VMEM is a non-issue).
    tb = _round_up(pl.cdiv(B, min_grid_steps), 128)
    tb = min(tb, _round_up(block_batch, 128))
    return max(tb, 128)


def mlp_kernel(x_ref, w1_ref, b1_ref, w2_ref, b2_ref, ot_ref):
    # x_ref : (tb, 52)   batch-major tile (only ever fed to the MXU)
    # w1_ref: (13, 52)   PyTorch layout (out_features, in_features)
    # b1_ref: (13, 1)
    # w2_ref: (3, 13)
    # b2_ref: (3, 1)
    # ot_ref: (3, tb)    feature-major (lane-dense) output tile
    x = x_ref[...]

    # fc1 (feature-major): h^T = w1 @ x^T -> (13, tb).
    # Contract both operands' last dims (A @ B^T form) so no XLU transpose of the
    # big x tile is inserted; only the tiny weight matrix is feature-major.
    h_t = jax.lax.dot_general(
        w1_ref[...], x,
        dimension_numbers=(((1,), (1,)), ((), ())),
        preferred_element_type=jnp.float32,
    )
    h_t = h_t + b1_ref[...]                       # (13, tb) + (13, 1)

    # sigmoid(z) = 0.5 * (tanh(z/2) + 1): a single EUP transcendental
    # (vs. exp + reciprocal = two pushes into the one EUP slot).
    h_t = 0.5 * (jnp.tanh(0.5 * h_t) + 1.0)

    # fc2: out^T = w2 @ h^T -> (3, tb), canonical (M,K)@(K,N).
    o_t = jax.lax.dot_general(
        w2_ref[...], h_t,
        dimension_numbers=(((1,), (0,)), ((), ())),
        preferred_element_type=jnp.float32,
    )
    ot_ref[...] = (o_t + b2_ref[...]).astype(ot_ref.dtype)


def softmax_regression_forward(x, w1, b1, w2, b2, *, block_batch=2048,
                               min_grid_steps=4):
    """Forward pass of SoftmaxRegressionModel (returns logits, like the nn.Module).

    Params follow the PyTorch nn.Linear convention:
      w1: (13, 52), b1: (13,), w2: (3, 13), b2: (3,).
    """
    B = x.shape[0]
    assert x.shape[1] == IN_DIM
    tb = _choose_tb(B, block_batch, min_grid_steps)
    grid = (pl.cdiv(B, tb),)

    b1c = b1.reshape(HID_DIM, 1).astype(jnp.float32)
    b2c = b2.reshape(OUT_DIM, 1).astype(jnp.float32)

    out_t = pl.pallas_call(
        mlp_kernel,
        out_shape=jax.ShapeDtypeStruct((OUT_DIM, B), jnp.float32),
        grid=grid,
        in_specs=[
            # x: tiled along batch (sublane dim); feature dim equals full array dim.
            pl.BlockSpec((tb, IN_DIM), lambda i: (i, 0)),
            # Weights/biases: constant index maps -> DMAs hoisted out of the grid
            # loop, resident in VMEM across all batch tiles.
            pl.BlockSpec((HID_DIM, IN_DIM), lambda i: (0, 0)),
            pl.BlockSpec((HID_DIM, 1), lambda i: (0, 0)),
            pl.BlockSpec((OUT_DIM, HID_DIM), lambda i: (0, 0)),
            pl.BlockSpec((OUT_DIM, 1), lambda i: (0, 0)),
        ],
        # Lane-dense output: lane dim = tb (multiple of 128, or the full B for
        # small batches) -> unmasked vector stores.
        out_specs=pl.BlockSpec((OUT_DIM, tb), lambda i: (0, i)),
        compiler_params=pltpu.CompilerParams(
            # Batch tiles are independent: allows megacore sharding on v7x.
            dimension_semantics=("parallel",),
        ),
    )(x, w1, b1c, w2, b2c)

    # Tiny (3, B) -> (B, 3) transpose in the wrapper (negligible: B*3*4 bytes).
    return out_t.T


def init_params(key):
    # Mimics nn.Linear default init U(-1/sqrt(fan_in), 1/sqrt(fan_in));
    # weights stored PyTorch-style as (out_features, in_features).
    k1, k2, k3, k4 = jax.random.split(key, 4)
    bound1 = 1.0 / jnp.sqrt(IN_DIM)
    bound2 = 1.0 / jnp.sqrt(HID_DIM)
    w1 = jax.random.uniform(k1, (HID_DIM, IN_DIM), jnp.float32, -bound1, bound1)
    b1 = jax.random.uniform(k2, (HID_DIM,), jnp.float32, -bound1, bound1)
    w2 = jax.random.uniform(k3, (OUT_DIM, HID_DIM), jnp.float32, -bound2, bound2)
    b2 = jax.random.uniform(k4, (OUT_DIM,), jnp.float32, -bound2, bound2)
    return w1, b1, w2, b2


def _reference(x, w1, b1, w2, b2):
    hp = jax.lax.Precision.HIGHEST
    h = jax.nn.sigmoid(jnp.dot(x, w1.T, precision=hp) + b1)
    return jnp.dot(h, w2.T, precision=hp) + b2


if __name__ == "__main__":
    key = jax.random.PRNGKey(0)
    kx, kp = jax.random.split(key)
    w1, b1, w2, b2 = init_params(kp)

    # Case 1: small batch consistent with the module (single full-extent tile).
    B_small = 16
    xs = jax.random.normal(kx, (B_small, IN_DIM), jnp.float32)
    outs = jax.block_until_ready(softmax_regression_forward(xs, w1, b1, w2, b2))
    refs = _reference(xs, w1, b1, w2, b2)
    assert outs.shape == (B_small, OUT_DIM)
    # Pure f32 + exact (tanh-form) sigmoid -> much tighter than the old 3e-2.
    assert jnp.allclose(outs, refs, atol=1e-3, rtol=1e-3), float(
        jnp.max(jnp.abs(outs - refs)))

    # Case 2: larger batch exercising the lane-aligned multi-tile grid path.
    B_big = 1024
    xb = jax.random.normal(jax.random.PRNGKey(1), (B_big, IN_DIM), jnp.float32)
    outb = jax.block_until_ready(softmax_regression_forward(xb, w1, b1, w2, b2))
    refb = _reference(xb, w1, b1, w2, b2)
    assert outb.shape == (B_big, OUT_DIM)
    assert jnp.allclose(outb, refb, atol=1e-3, rtol=1e-3), float(
        jnp.max(jnp.abs(outb - refb)))

    print("KERNEL_OK")
</pallas_src>

<mosaic_0001>
module attributes {stable_mosaic.version = 11 : i64} {
  func.func @mlp_kernel(%arg0: i32, %arg1: memref<16x52xf32, #tpu.memory_space<vmem>>, %arg2: memref<13x52xf32, #tpu.memory_space<vmem>>, %arg3: memref<13x1xf32, #tpu.memory_space<vmem>>, %arg4: memref<3x13xf32, #tpu.memory_space<vmem>>, %arg5: memref<3x1xf32, #tpu.memory_space<vmem>>, %arg6: memref<3x16xf32, #tpu.memory_space<vmem>>) attributes {dimension_semantics = [#tpu.dimension_semantics<parallel>], iteration_bounds = array<i64: 1>, scalar_prefetch = 0 : i64, scratch_operands = 0 : i64, tpu.core_type = #tpu.core_type<tc>, window_params = [{transform_indices = @transform_0, window_bounds = array<i64: 16, 52>}, {pipeline_mode = #tpu.pipeline_mode<synchronous>, transform_indices = @transform_1, window_bounds = array<i64: 13, 52>}, {pipeline_mode = #tpu.pipeline_mode<synchronous>, transform_indices = @transform_2, window_bounds = array<i64: 13, 1>}, {pipeline_mode = #tpu.pipeline_mode<synchronous>, transform_indices = @transform_3, window_bounds = array<i64: 3, 13>}, {pipeline_mode = #tpu.pipeline_mode<synchronous>, transform_indices = @transform_4, window_bounds = array<i64: 3, 1>}, {transform_indices = @transform_5, window_bounds = array<i64: 3, 16>}]} {
    %c0 = arith.constant 0 : index
    %c0_0 = arith.constant 0 : index
    %0 = vector.load %arg1[%c0, %c0_0] : memref<16x52xf32, #tpu.memory_space<vmem>>, vector<16x52xf32>
    %c0_1 = arith.constant 0 : index
    %c0_2 = arith.constant 0 : index
    %1 = vector.load %arg2[%c0_1, %c0_2] : memref<13x52xf32, #tpu.memory_space<vmem>>, vector<13x52xf32>
    %cst = arith.constant dense<0.000000e+00> : vector<13x16xf32>
    %2 = tpu.matmul %1, %0, %cst {dimension_numbers = #tpu.dot_dimension_numbers<[1], [1], [0], [0], [0, 0, 1, 0], [], []>} : vector<13x52xf32>, vector<16x52xf32>, vector<13x16xf32> -> vector<13x16xf32>
    %c0_3 = arith.constant 0 : index
    %c0_4 = arith.constant 0 : index
    %3 = vector.load %arg3[%c0_3, %c0_4] : memref<13x1xf32, #tpu.memory_space<vmem>>, vector<13x1xf32>
    %4 = vector.broadcast %3 : vector<13x1xf32> to vector<13x16xf32>
    %5 = arith.addf %2, %4 : vector<13x16xf32>
    %cst_5 = arith.constant 5.000000e-01 : f32
    %6 = vector.broadcast %cst_5 : f32 to vector<13x16xf32>
    %7 = arith.mulf %6, %5 : vector<13x16xf32>
    %8 = math.tanh %7 : vector<13x16xf32>
    %cst_6 = arith.constant 1.000000e+00 : f32
    %9 = vector.broadcast %cst_6 : f32 to vector<13x16xf32>
    %10 = arith.addf %8, %9 : vector<13x16xf32>
    %cst_7 = arith.constant 5.000000e-01 : f32
    %11 = vector.broadcast %cst_7 : f32 to vector<13x16xf32>
    %12 = arith.mulf %11, %10 : vector<13x16xf32>
    %c0_8 = arith.constant 0 : index
    %c0_9 = arith.constant 0 : index
    %13 = vector.load %arg4[%c0_8, %c0_9] : memref<3x13xf32, #tpu.memory_space<vmem>>, vector<3x13xf32>
    %cst_10 = arith.constant dense<0.000000e+00> : vector<3x16xf32>
    %14 = tpu.matmul %13, %12, %cst_10 {dimension_numbers = #tpu.dot_dimension_numbers<[1], [0], [0], [1], [0, 0, 1, 1], [], []>} : vector<3x13xf32>, vector<13x16xf32>, vector<3x16xf32> -> vector<3x16xf32>
    %c0_11 = arith.constant 0 : index
    %c0_12 = arith.constant 0 : index
    %15 = vector.load %arg5[%c0_11, %c0_12] : memref<3x1xf32, #tpu.memory_space<vmem>>, vector<3x1xf32>
    %16 = vector.broadcast %15 : vector<3x1xf32> to vector<3x16xf32>
    %17 = arith.addf %14, %16 : vector<3x16xf32>
    %c0_13 = arith.constant 0 : index
    %c0_14 = arith.constant 0 : index
    %18 = vector.load %arg6[%c0_13, %c0_14] : memref<3x16xf32, #tpu.memory_space<vmem>>, vector<3x16xf32>
    tpu.vector_store %arg6[%c0_13, %c0_14], %17 {strides = array<i32>} : memref<3x16xf32, #tpu.memory_space<vmem>>, vector<3x16xf32>,
    return
  }
  func.func @transform_0(%arg0: i32) -> (i32, i32) {
    %c0_i32 = arith.constant 0 : i32
    %c0_i32_0 = arith.constant 0 : i32
    return %arg0, %c0_i32 : i32, i32
  }
  func.func @transform_1(%arg0: i32) -> (i32, i32) {
    %c0_i32 = arith.constant 0 : i32
    %c0_i32_0 = arith.constant 0 : i32
    %c0_i32_1 = arith.constant 0 : i32
    return %c0_i32, %c0_i32_0 : i32, i32
  }
  func.func @transform_2(%arg0: i32) -> (i32, i32) {
    %c0_i32 = arith.constant 0 : i32
    %c0_i32_0 = arith.constant 0 : i32
    %c0_i32_1 = arith.constant 0 : i32
    return %c0_i32, %c0_i32_0 : i32, i32
  }
  func.func @transform_3(%arg0: i32) -> (i32, i32) {
    %c0_i32 = arith.constant 0 : i32
    %c0_i32_0 = arith.constant 0 : i32
    %c0_i32_1 = arith.constant 0 : i32
    return %c0_i32, %c0_i32_0 : i32, i32
  }
  func.func @transform_4(%arg0: i32) -> (i32, i32) {
    %c0_i32 = arith.constant 0 : i32
    %c0_i32_0 = arith.constant 0 : i32
    %c0_i32_1 = arith.constant 0 : i32
    return %c0_i32, %c0_i32_0 : i32, i32
  }
  func.func @transform_5(%arg0: i32) -> (i32, i32) {
    %c0_i32 = arith.constant 0 : i32
    %c0_i32_0 = arith.constant 0 : i32
    return %c0_i32, %arg0 : i32, i32
  }
}

</mosaic_0001>

<llo_original>
// kernel: tpu_custom_call.1
$region0: #{tpu_custom_call.1}
  #allocation0 [shape = 'u32[]', space=smem, size = 0x4, offset = 0x4, fixed_abs, tag = 'smem constant byte address 0x4 - core index']
  #allocation1 [shape = 'u32[144,128]{1,0:T(1,128)}', space=vmem, size = 0x12000, scoped, tag = 'internal scratch']
  %s0 = inlined_call_operand.vmem [shape: f32[16,52], index: 0, kind: input, shape index: {}]
  %s1 = inlined_call_operand.hbm [shape: f32[13,52], index: 1, kind: input, shape index: {}]
  %s2 = inlined_call_operand.vmem [shape: f32[13,1], index: 2, kind: input, shape index: {}]
  %s3 = inlined_call_operand.vmem [shape: f32[3,13], index: 3, kind: input, shape index: {}]
  %s4 = inlined_call_operand.vmem [shape: f32[3,1], index: 4, kind: input, shape index: {}]
  %s5 = inlined_call_operand.hbm [shape: f32[3,16], index: 5, kind: output, shape index: {}]
  %s6 = sld [smem:[#allocation0]]
  $region34: #{tpu_custom_call.1} parent=0
    _
  %s8 = ssub.s32 1, %s6
  %s9 = scalar_select 0, %s8, %s6
  $region1: #{tpu_custom_call.1} parent=0
    #allocation2 [shape = 'u8[8192]{0}', space=vmem, size = 0x2000, scoped, tag = 'input window, operand 1, single buffered']
    #allocation3 [shape = 's32[1]{0}', space=sflag, size = 0x4, scoped, tag = 'scoped memory for tpu_custom_call.1']
    #allocation4 [shape = 's32[1]{0}', space=sflag, size = 0x4, scoped, tag = 'scoped memory for tpu_custom_call.1']
    #allocation5 [shape = 'u8[2048]{0}', space=vmem, size = 0x800, scoped, tag = 'output window, operand 0, single buffered']
    %10 = vsyncpa [#allocation3], 0
    %11 = vsyncpa [#allocation4], 0
    // Predicated region
    $region2: #{tpu_custom_call.1} parent=1 // pred_check
      _
    $region3: #{tpu_custom_call.1} parent=1 // pred_check_branch
      %13 = sbr.rel (0) target = $region5
    $region4: #{tpu_custom_call.1} parent=1 // pred_region
      _
    $region5: #{tpu_custom_call.1} parent=1 // pred_fallthru
      _
    // Predicated region
    $region6: #{tpu_custom_call.1} parent=1 // pred_check
      _
    $region7: #{tpu_custom_call.1} parent=1 // pred_check_branch
      %15 = sbr.rel (0) target = $region9
    $region8: #{tpu_custom_call.1} parent=1 // pred_region
      %s17 = ssub.s32 256, 256
      %18 = vsyncadd [#allocation3], %s17
      %s19 = sshll.u32 [#allocation2], 4
      %s20 = int_to_ptr.vmem [resolvable:$true] %s19
      %25 = dma.hbm_to_vmem [thread:$0]  %s1, 256, %s20, [#allocation3], 128, 128, 8
    $region9: #{tpu_custom_call.1} parent=1 // pred_fallthru
      _
    // Predicated region
    $region10: #{tpu_custom_call.1} parent=1 // pred_check
      _
    $region11: #{tpu_custom_call.1} parent=1 // pred_check_branch
      %27 = sbr.rel (0) target = $region13
    $region12: #{tpu_custom_call.1} parent=1 // pred_region
      _
    $region13: #{tpu_custom_call.1} parent=1 // pred_fallthru
      _
    // Predicated region
    $region14: #{tpu_custom_call.1} parent=1 // pred_check
      _
    $region15: #{tpu_custom_call.1} parent=1 // pred_check_branch
      %29 = sbr.rel (0) target = $region17
    $region16: #{tpu_custom_call.1} parent=1 // pred_region
      _
    $region17: #{tpu_custom_call.1} parent=1 // pred_fallthru
      _
    // Predicated region
    $region18: #{tpu_custom_call.1} parent=1 // pred_check
      _
    $region19: #{tpu_custom_call.1} parent=1 // pred_check_branch
      %31 = sbr.rel (0) target = $region21
    $region20: #{tpu_custom_call.1} parent=1 // pred_region
      _
    $region21: #{tpu_custom_call.1} parent=1 // pred_fallthru
      _
    // Predicated region
    $region22: #{tpu_custom_call.1} parent=1 // pred_check
      _
    $region23: #{tpu_custom_call.1} parent=1 // pred_check_branch
      %33 = sbr.rel (0) target = $region25
    $region24: #{tpu_custom_call.1} parent=1 // pred_region
      %34 = dma.done [#allocation3], 256
    $region25: #{tpu_custom_call.1} parent=1 // pred_fallthru
      _
    %v35 = vld [vmem:[%s0] sm:$0xff]
    %v36 = vld [vmem:[%s0 + $0x8] sm:$0xff]
    %v37 = vld [vmem:[#allocation2] sm:$0xff]
    %v38 = vld [vmem:[#allocation2 + $0x8] sm:$0x1f]
    %v39 = vld [vmem:[%s2] sm:$0xff]
    %v40 = vld [vmem:[%s2 + $0x8] sm:$0x1f]
    %42 = vset.pattern.permute.xlu0 0
    %43 = vperm.xlu0 %42, %v39
    %v44 = vpop.permute.xlu0 %43
    %47 = vset.pattern.permute.xlu0 0
    %48 = vperm.xlu0 %47, %v40
    %v49 = vpop.permute.xlu0 %48
    %vm51 = vcmask 424960
    %v53 = vsel %vm51, %v37, 0
    %v56 = vsel %vm51, %v38, 0
    %v59 = vsel %vm51, %v35, 0
    %v62 = vsel %vm51, %v36, 0
    %64 = vmatprep.subr.mxu0 0.0
    %65 = vmatpush1.xpose.msra.mxu0 0.0
    %66 = vmatprep.subr.mxu0 0.0
    %67 = vmatpush1.xpose.msra.mxu0 0.0
    %68 = vmatprep.subr.mxu0 0.0
    %69 = vmatpush1.xpose.msra.mxu0 0.0
    %70 = vmatprep.subr.mxu0 0.0
    %71 = vmatpush1.xpose.msra.mxu0 0.0
    %72 = vmatprep.subr.mxu0 0.0
    %73 = vmatpush1.xpose.msra.mxu0 0.0
    %74 = vmatprep.subr.mxu0 0.0
    %75 = vmatpush1.xpose.msra.mxu0 0.0
    %76 = vmatprep.subr.mxu0 0.0
    %77 = vmatpush1.xpose.msra.mxu0 0.0
    %78 = vmatprep.subr.mxu0 0.0
    %79 = vmatpush1.xpose.msra.mxu0 0.0
    %80 = vmatprep.subr.mxu0 0.0
    %81 = vmatpush1.xpose.msra.mxu0 0.0
    %82 = vmatprep.subr.mxu0 0.0
    %83 = vmatpush1.xpose.msra.mxu0 0.0
    %84 = vmatprep.subr.mxu0 0.0
    %85 = vmatpush1.xpose.msra.mxu0 0.0
    %86 = vmatprep.subr.mxu0 0.0
    %87 = vmatpush1.xpose.msra.mxu0 0.0
    %88 = vmatprep.subr.mxu0 0.0
    %89 = vmatpush1.xpose.msra.mxu0 0.0
    %90 = vmatprep.subr.mxu0 0.0
    %91 = vmatpush1.xpose.msra.mxu0 0.0
    %92 = vmatprep.subr.mxu0 0.0
    %93 = vmatpush1.xpose.msra.mxu0 %v62
    %94 = vmatprep.subr.mxu0 0.0
    %95 = vmatpush1.xpose.msra.mxu0 %v59
    %96 = vmatprep.subr.mxu0 0.0
    %97 = vmatpush2.xpose.msra.mxu0 0.0
    %98 = vmatprep.subr.mxu0 0.0
    %99 = vmatpush2.xpose.msra.mxu0 0.0
    %100 = vmatprep.subr.mxu0 0.0
    %101 = vmatpush2.xpose.msra.mxu0 0.0
    %102 = vmatprep.subr.mxu0 0.0
    %103 = vmatpush2.xpose.msra.mxu0 0.0
    %104 = vmatprep.subr.mxu0 0.0
    %105 = vmatpush2.xpose.msra.mxu0 0.0
    %106 = vmatprep.subr.mxu0 0.0
    %107 = vmatpush2.xpose.msra.mxu0 0.0
    %108 = vmatprep.subr.mxu0 0.0
    %109 = vmatpush2.xpose.msra.mxu0 0.0
    %110 = vmatprep.subr.mxu0 0.0
    %111 = vmatpush2.xpose.msra.mxu0 0.0
    %112 = vmatprep.subr.mxu0 0.0
    %113 = vmatpush2.xpose.msra.mxu0 0.0
    %114 = vmatprep.subr.mxu0 0.0
    %115 = vmatpush2.xpose.msra.mxu0 0.0
    %116 = vmatprep.subr.mxu0 0.0
    %117 = vmatpush2.xpose.msra.mxu0 0.0
    %118 = vmatprep.subr.mxu0 0.0
    %119 = vmatpush2.xpose.msra.mxu0 0.0
    %120 = vmatprep.subr.mxu0 0.0
    %121 = vmatpush2.xpose.msra.mxu0 0.0
    %122 = vmatprep.subr.mxu0 0.0
    %123 = vmatpush2.xpose.msra.mxu0 0.0
    %124 = vmatprep.subr.mxu0 0.0
    %125 = vmatpush2.xpose.msra.mxu0 0.0
    %126 = vmatprep.subr.mxu0 0.0
    %127 = vmatpush2.xpose.msra.mxu0 0.0
    %128 = vmatprep.mubr.f32.mxu0 0.0
    %129 = vmatmul.mubr.f32.gmra.mxu0 %v53
    %v130 = vpop.f32.mrf.mxu0
    %v131 = vadd.f32 %v44, %v130
    %v132 = vpop.f32.mrf.mxu0
    %133 = vmatprep.mubr.f32.mxu0 0.0
    %134 = vmatmul.mubr.f32.gmra.mxu0 %v56
    %v135 = vpop.f32.mrf.mxu0
    %v136 = vadd.f32 %v49, %v135
    %v137 = vpop.f32.mrf.mxu0
    %138 = vdwg.mxu0
    %v139 = vmul.f32 %v131, 0.5
    %v140 = vmul.f32 %v136, 0.5
    %v141 = vtanh.pop %v139
    %v142 = vtanh.pop %v140
    %v143 = vadd.f32 %v141, 1.0
    %v144 = vadd.f32 %v142, 1.0
    %v145 = vmul.f32 %v143, 0.5
    %v146 = vmul.f32 %v144, 0.5
    %v147 = vld [vmem:[%s3] sm:$0x7]
    %v148 = vld [vmem:[%s4] sm:$0x7]
    %150 = vset.pattern.permute.xlu0 0
    %151 = vperm.xlu0 %150, %v148
    %v152 = vpop.permute.xlu0 %151
    %vm154 = vcmask 105472
    %v156 = vsel %vm154, %v147, 0
    %vm158 = vcmask 1044480
    %v160 = vsel %vm158, %v146, 0
    %162 = vmatprep.subr.mxu0 0.0
    %163 = vmatpush1.msra.mxu0 0.0
    %164 = vmatprep.subr.mxu0 0.0
    %165 = vmatpush1.msra.mxu0 0.0
    %166 = vmatprep.subr.mxu0 0.0
    %167 = vmatpush1.msra.mxu0 0.0
    %168 = vmatprep.subr.mxu0 0.0
    %169 = vmatpush1.msra.mxu0 0.0
    %170 = vmatprep.subr.mxu0 0.0
    %171 = vmatpush1.msra.mxu0 0.0
    %172 = vmatprep.subr.mxu0 0.0
    %173 = vmatpush1.msra.mxu0 0.0
    %174 = vmatprep.subr.mxu0 0.0
    %175 = vmatpush1.msra.mxu0 0.0
    %176 = vmatprep.subr.mxu0 0.0
    %177 = vmatpush1.msra.mxu0 0.0
    %178 = vmatprep.subr.mxu0 0.0
    %179 = vmatpush1.msra.mxu0 0.0
    %180 = vmatprep.subr.mxu0 0.0
    %181 = vmatpush1.msra.mxu0 0.0
    %182 = vmatprep.subr.mxu0 0.0
    %183 = vmatpush1.msra.mxu0 0.0
    %184 = vmatprep.subr.mxu0 0.0
    %185 = vmatpush1.msra.mxu0 0.0
    %186 = vmatprep.subr.mxu0 0.0
    %187 = vmatpush1.msra.mxu0 0.0
    %188 = vmatprep.subr.mxu0 0.0
    %189 = vmatpush1.msra.mxu0 0.0
    %190 = vmatprep.subr.mxu0 0.0
    %191 = vmatpush1.msra.mxu0 %v160
    %192 = vmatprep.subr.mxu0 0.0
    %193 = vmatpush1.msra.mxu0 %v145
    %194 = vmatprep.subr.mxu0 0.0
    %195 = vmatpush2.msra.mxu0 0.0
    %196 = vmatprep.subr.mxu0 0.0
    %197 = vmatpush2.msra.mxu0 0.0
    %198 = vmatprep.subr.mxu0 0.0
    %199 = vmatpush2.msra.mxu0 0.0
    %200 = vmatprep.subr.mxu0 0.0
    %201 = vmatpush2.msra.mxu0 0.0
    %202 = vmatprep.subr.mxu0 0.0
    %203 = vmatpush2.msra.mxu0 0.0
    %204 = vmatprep.subr.mxu0 0.0
    %205 = vmatpush2.msra.mxu0 0.0
    %206 = vmatprep.subr.mxu0 0.0
    %207 = vmatpush2.msra.mxu0 0.0
    %208 = vmatprep.subr.mxu0 0.0
    %209 = vmatpush2.msra.mxu0 0.0
    %210 = vmatprep.subr.mxu0 0.0
    %211 = vmatpush2.msra.mxu0 0.0
    %212 = vmatprep.subr.mxu0 0.0
    %213 = vmatpush2.msra.mxu0 0.0
    %214 = vmatprep.subr.mxu0 0.0
    %215 = vmatpush2.msra.mxu0 0.0
    %216 = vmatprep.subr.mxu0 0.0
    %217 = vmatpush2.msra.mxu0 0.0
    %218 = vmatprep.subr.mxu0 0.0
    %219 = vmatpush2.msra.mxu0 0.0
    %220 = vmatprep.subr.mxu0 0.0
    %221 = vmatpush2.msra.mxu0 0.0
    %222 = vmatprep.subr.mxu0 0.0
    %223 = vmatpush2.msra.mxu0 0.0
    %224 = vmatprep.subr.mxu0 0.0
    %225 = vmatpush2.msra.mxu0 0.0
    %226 = vmatprep.mubr.f32.mxu0 0.0
    %227 = vmatmul.mubr.f32.gmra.mxu0 %v156
    %v228 = vpop.f32.mrf.mxu0
    %v229 = vadd.f32 %v152, %v228
    %v230 = vpop.f32.mrf.mxu0
    %231 = vdwg.mxu0
    %vm232 = vcmask 124928
    %233 = vst.msk [vmem:[#allocation5] sm:$0x7] %vm232, %v229
    // Predicated region
    $region26: #{tpu_custom_call.1} parent=1 // pred_check
      _
    $region27: #{tpu_custom_call.1} parent=1 // pred_check_branch
      %235 = sbr.rel (0) target = $region29
    $region28: #{tpu_custom_call.1} parent=1 // pred_region
      %s237 = ssub.s32 64, 64
      %238 = vsyncadd [#allocation4], %s237
      %s240 = sshll.u32 [#allocation5], 4
      %s241 = int_to_ptr.vmem [resolvable:$true] %s240
      %243 = dma.vmem_to_hbm [thread:$0]  %s241, 64, %s5, [#allocation4]
    $region29: #{tpu_custom_call.1} parent=1 // pred_fallthru
      _
    // Predicated region
    $region30: #{tpu_custom_call.1} parent=1 // pred_check
      _
    $region31: #{tpu_custom_call.1} parent=1 // pred_check_branch
      %245 = sbr.rel (0) target = $region33
    $region32: #{tpu_custom_call.1} parent=1 // pred_region
      %246 = dma.done [#allocation4], 64
    $region33: #{tpu_custom_call.1} parent=1 // pred_fallthru
      _
    %247 = vsyncpa [#allocation3], 1
    %248 = vsyncpa [#allocation4], 1

</llo_original>
